<compile_context>
chip_gen: v5e
topology: v5e:2x2
jax: 0.10.0
libtpu: 0.0.40
codegen_flags: <defaults>
</compile_context>

<pallas_src>
import jax
import jax.numpy as jnp
from jax.experimental import pallas as pl
from jax.experimental.pallas import tpu as pltpu

_LANE_CANDIDATES = (1024, 512, 256, 128)  # lane-dense last dims (multiples of 128)
_MAX_BLOCK_BYTES = 4 * 1024 * 1024        # 4 MiB blocks -> 16 MiB double-buffered pipeline
_VMEM_LIMIT_BYTES = 32 * 1024 * 1024      # explicit so 16 MiB pipeline is safe on v5e too


def normalization(x, mean, std, *, donate_input=False):
    """Pallas equivalent of Normalization.forward: (x - mean) / std.

    x: array of shape (N, C, H, W) (any shape works — the op is elementwise).
    mean, std: static Python scalars (the module stores them as (1,1,1,1)
               buffers), broadcast over the whole tensor.
    Note: computed as x * (1/std) + (-mean/std); differs from an exact divide
    by ~1 ulp.
    """
    orig_shape = x.shape
    total = int(x.size)
    itemsize = jnp.dtype(x.dtype).itemsize

    # Fused scale/shift baked in as immediates (mean/std are static constants).
    inv = 1.0 / float(std)
    bias = -float(mean) * inv

    # Largest lane-dense last dim that divides the element count exactly:
    # avoids any jnp.pad of the input and any output strip (each of those
    # would be a full extra HBM read+write pass).
    lanes = next((l for l in _LANE_CANDIDATES if total > 0 and total % l == 0), None)
    if lanes is None:
        # Rare ragged case (size not a multiple of 128): a reshape-based Pallas
        # path would need a full-tensor pad + strip (2 extra HBM passes), which
        # costs more than XLA's fused single-pass elementwise op.
        return (x * jnp.float32(inv) + jnp.float32(bias)).astype(x.dtype)

    rows = total // lanes
    x2 = x.reshape(rows, lanes)  # contiguous reshape: free, no copy

    # Row tiling: blocks of (tr, lanes) with tr a multiple of 8 (or == rows for
    # tiny inputs).  Cap block bytes at 4 MiB and guarantee >= 2 grid steps
    # whenever possible so v7x's second TensorCore isn't idle.
    max_tr = max(8, (_MAX_BLOCK_BYTES // (lanes * itemsize)) // 8 * 8)
    if rows <= 8:
        tr = rows                                   # single block == full array
    else:
        tr = min(max_tr, max(8, (rows // 2) // 8 * 8))
    grid = (pl.cdiv(rows, tr),)                     # ragged final block is masked

    def _norm_kernel(x_ref, o_ref):
        # y = x * (1/std) + (-mean/std), with immediates (pure vmul + vadd).
        o_ref[...] = (x_ref[...] * inv + bias).astype(o_ref.dtype)

    out2 = pl.pallas_call(
        _norm_kernel,
        out_shape=jax.ShapeDtypeStruct((rows, lanes), x.dtype),
        grid=grid,
        in_specs=[pl.BlockSpec((tr, lanes), lambda i: (i, 0))],
        out_specs=pl.BlockSpec((tr, lanes), lambda i: (i, 0)),
        compiler_params=pltpu.CompilerParams(
            dimension_semantics=("parallel",),
            vmem_limit_bytes=_VMEM_LIMIT_BYTES,
        ),
        cost_estimate=pl.CostEstimate(
            flops=2 * total,
            transcendentals=0,
            bytes_accessed=2 * itemsize * total,
        ),
        # In-place write only when the caller donates x; otherwise XLA would
        # insert a defensive copy (an extra HBM pass) to preserve the input.
        input_output_aliases=({0: 0} if donate_input else {}),
    )(x2)

    return out2.reshape(orig_shape)


if __name__ == "__main__":
    # MNIST-style scalar mean / std (as the module stores via (1,1,1,1) tensors).
    MEAN = 0.1307
    STD = 0.3081

    key = jax.random.PRNGKey(0)
    x = jax.random.uniform(key, (2, 4, 16, 16), dtype=jnp.float32)

    y = jax.block_until_ready(normalization(x, MEAN, STD))

    # Reference check against plain JAX broadcast semantics.
    y_ref = (x - jnp.float32(MEAN)) / jnp.float32(STD)
    assert y.shape == x.shape and y.dtype == x.dtype
    assert jnp.allclose(y, y_ref, rtol=1e-5, atol=1e-5)

    print("KERNEL_OK")
</pallas_src>

<mosaic_0001>
module attributes {stable_mosaic.version = 11 : i64} {
  func.func @_norm_kernel(%arg0: i32, %arg1: memref<2x1024xf32, #tpu.memory_space<vmem>>, %arg2: memref<2x1024xf32, #tpu.memory_space<vmem>>) attributes {dimension_semantics = [#tpu.dimension_semantics<parallel>], iteration_bounds = array<i64: 1>, scalar_prefetch = 0 : i64, scratch_operands = 0 : i64, tpu.core_type = #tpu.core_type<tc>, window_params = [{transform_indices = @transform_0, window_bounds = array<i64: 2, 1024>}, {transform_indices = @transform_1, window_bounds = array<i64: 2, 1024>}]} {
    %c0 = arith.constant 0 : index
    %c0_0 = arith.constant 0 : index
    %0 = vector.load %arg1[%c0, %c0_0] : memref<2x1024xf32, #tpu.memory_space<vmem>>, vector<2x1024xf32>
    %cst = arith.constant 3.24569941 : f32
    %1 = vector.broadcast %cst : f32 to vector<2x1024xf32>
    %2 = arith.mulf %0, %1 : vector<2x1024xf32>
    %cst_1 = arith.constant -0.424212933 : f32
    %3 = vector.broadcast %cst_1 : f32 to vector<2x1024xf32>
    %4 = arith.addf %2, %3 : vector<2x1024xf32>
    %c0_2 = arith.constant 0 : index
    %c0_3 = arith.constant 0 : index
    %5 = vector.load %arg2[%c0_2, %c0_3] : memref<2x1024xf32, #tpu.memory_space<vmem>>, vector<2x1024xf32>
    tpu.vector_store %arg2[%c0_2, %c0_3], %4 {strides = array<i32>} : memref<2x1024xf32, #tpu.memory_space<vmem>>, vector<2x1024xf32>,
    return
  }
  func.func @transform_0(%arg0: i32) -> (i32, i32) {
    %c0_i32 = arith.constant 0 : i32
    %c0_i32_0 = arith.constant 0 : i32
    return %arg0, %c0_i32 : i32, i32
  }
  func.func @transform_1(%arg0: i32) -> (i32, i32) {
    %c0_i32 = arith.constant 0 : i32
    %c0_i32_0 = arith.constant 0 : i32
    return %arg0, %c0_i32 : i32, i32
  }
}

</mosaic_0001>

<llo_original>
// kernel: tpu_custom_call.1
$region0: #{tpu_custom_call.1}
  #allocation0 [shape = 'u32[]', space=smem, size = 0x4, offset = 0x4, fixed_abs, tag = 'smem constant byte address 0x4 - core index']
  #allocation1 [shape = 'u32[72,128]{1,0:T(1,128)}', space=vmem, size = 0x9000, scoped, tag = 'internal scratch']
  %s0 = inlined_call_operand.hbm [shape: f32[2,1024], index: 0, kind: input, shape index: {}]
  %s1 = inlined_call_operand.hbm [shape: f32[2,1024], index: 1, kind: output, shape index: {}]
  %s2 = sld [smem:[#allocation0]]
  $region18: #{tpu_custom_call.1} parent=0
    _
  %s4 = ssub.s32 1, %s2
  %s5 = scalar_select 0, %s4, %s2
  $region1: #{tpu_custom_call.1} parent=0
    #allocation2 [shape = 'u8[8192]{0}', space=vmem, size = 0x2000, scoped, tag = 'input window, operand 0, single buffered']
    #allocation3 [shape = 's32[1]{0}', space=sflag, size = 0x4, scoped, tag = 'scoped memory for tpu_custom_call.1']
    #allocation4 [shape = 's32[1]{0}', space=sflag, size = 0x4, scoped, tag = 'scoped memory for tpu_custom_call.1']
    #allocation5 [shape = 'u8[8192]{0}', space=vmem, size = 0x2000, scoped, tag = 'output window, operand 0, single buffered']
    %6 = vsyncpa [#allocation3], 0
    %7 = vsyncpa [#allocation4], 0
    // Predicated region
    $region2: #{tpu_custom_call.1} parent=1 // pred_check
      _
    $region3: #{tpu_custom_call.1} parent=1 // pred_check_branch
      %9 = sbr.rel (0) target = $region5
    $region4: #{tpu_custom_call.1} parent=1 // pred_region
      %11 = vsyncadd [#allocation3], 0
      %s13 = sshll.u32 %s0, 4
      %s14 = int_to_ptr.hbm [resolvable:$true] %s13
      %s15 = sshll.u32 [#allocation2], 4
      %s16 = int_to_ptr.vmem [resolvable:$true] %s15
      %18 = dma.hbm_to_vmem [thread:$0]  %s14, 256, %s16, [#allocation3]
    $region5: #{tpu_custom_call.1} parent=1 // pred_fallthru
      _
    // Predicated region
    $region6: #{tpu_custom_call.1} parent=1 // pred_check
      _
    $region7: #{tpu_custom_call.1} parent=1 // pred_check_branch
      %20 = sbr.rel (0) target = $region9
    $region8: #{tpu_custom_call.1} parent=1 // pred_region
      %22 = dma.done [#allocation3], 256
    $region9: #{tpu_custom_call.1} parent=1 // pred_fallthru
      _
    %v23 = vld [vmem:[#allocation2] sm:$0xff]
    %v24 = vld [vmem:[#allocation2 + $0x8] sm:$0xff]
    %v25 = vmul.f32 %v23, 3.2456994
    %v26 = vmul.f32 %v24, 3.2456994
    %v27 = vadd.f32 %v25, -0.42421293
    %v28 = vadd.f32 %v26, -0.42421293
    %29 = vst [vmem:[#allocation5] sm:$0xff] %v27
    %30 = vst [vmem:[#allocation5 + $0x8] sm:$0xff] %v28
    // Predicated region
    $region10: #{tpu_custom_call.1} parent=1 // pred_check
      _
    $region11: #{tpu_custom_call.1} parent=1 // pred_check_branch
      %32 = sbr.rel (0) target = $region13
    $region12: #{tpu_custom_call.1} parent=1 // pred_region
      %34 = vsyncadd [#allocation4], 0
      %s36 = sshll.u32 [#allocation5], 4
      %s37 = int_to_ptr.vmem [resolvable:$true] %s36
      %s38 = sshll.u32 %s1, 4
      %s39 = int_to_ptr.hbm [resolvable:$true] %s38
      %41 = dma.vmem_to_hbm [thread:$0]  %s37, 256, %s39, [#allocation4]
    $region13: #{tpu_custom_call.1} parent=1 // pred_fallthru
      _
    // Predicated region
    $region14: #{tpu_custom_call.1} parent=1 // pred_check
      _
    $region15: #{tpu_custom_call.1} parent=1 // pred_check_branch
      %43 = sbr.rel (0) target = $region17
    $region16: #{tpu_custom_call.1} parent=1 // pred_region
      %45 = dma.done [#allocation4], 256
    $region17: #{tpu_custom_call.1} parent=1 // pred_fallthru
      _
    %46 = vsyncpa [#allocation3], 1
    %47 = vsyncpa [#allocation4], 1

</llo_original>
